<compile_context>
chip_gen: v7x
topology: tpu7x:2x2x1
jax: 0.10.0
libtpu: 0.0.40
codegen_flags: <defaults>
</compile_context>

<pallas_src>
import math

import jax
import jax.numpy as jnp
from jax.experimental import pallas as pl
from jax.experimental.pallas import tpu as pltpu


def _pos_add_kernel(x_ref, pe_ref, o_ref):
    # x_ref: (ts, B, D)   pe_ref: (ts, 1, D)   o_ref: (ts, B, D)
    # Pure VPU elementwise add; pe sublane-broadcasts over the batch axis.
    # The add runs in the promoted dtype (PyTorch: f32 pe promotes bf16/f16 inputs).
    # TODO(synk): training-mode dropout (p > 0) would need pltpu.prng_seed /
    #             pltpu.prng_random_bits + 1/(1-p) scaling; identity in eval mode.
    o_ref[...] = x_ref[...].astype(o_ref.dtype) + pe_ref[...].astype(o_ref.dtype)


def sinusoidal_pos_encoding(max_len, d_model, dtype=jnp.float32):
    """Same buffer as the PyTorch module: shape (max_len, 1, d_model), float32 by default."""
    positions = jnp.arange(max_len, dtype=jnp.float32)[:, None]                  # (L, 1)
    division_term = jnp.exp(
        jnp.arange(0, d_model, 2, dtype=jnp.float32) * (-math.log(10000.0) / d_model)
    )                                                                             # (ceil(D/2),)
    angles = positions * division_term                                            # (L, ceil(D/2))
    pe = jnp.zeros((max_len, d_model), dtype=jnp.float32)
    pe = pe.at[:, 0::2].set(jnp.sin(angles))
    pe = pe.at[:, 1::2].set(jnp.cos(angles)[:, : d_model // 2])                   # odd-D safe
    return pe[:, None, :].astype(dtype)                                           # (L, 1, D)


def _round_up(n, m):
    return ((n + m - 1) // m) * m


def _padded_block_bytes(shape, dtype):
    """Bytes one VMEM block really occupies: last dim rounds up to 128 lanes, the
    second-to-last rounds up to the sublane count (8 for 32-bit, 16 for 16-bit, ...)."""
    itemsize = jnp.dtype(dtype).itemsize
    sublanes = 8 * max(1, 4 // itemsize)
    dims = list(shape)
    dims[-1] = _round_up(dims[-1], 128)
    if len(dims) >= 2:
        dims[-2] = _round_up(dims[-2], sublanes)
    n = 1
    for d in dims:
        n *= d
    return n * itemsize


def _pick_seq_tile(S, B, D, x_dtype, pe_dtype, out_dtype, *,
                   target_block_bytes, min_block_bytes, vmem_budget_bytes):
    """Choose the seq-tile length `ts` for (ts, B, D) blocks.

    * No divisibility requirement on S (grid uses cdiv; Pallas masks the ragged tail).
    * Budget uses padded, double-buffered VMEM bytes for x + out + pe blocks.
    * Prefers an even number of grid steps (v7x megacore) while blocks stay >= min size.
    """
    per_row_x = _padded_block_bytes((1, B, D), x_dtype)
    per_row_all = 2 * (per_row_x
                       + _padded_block_bytes((1, B, D), out_dtype)
                       + _padded_block_bytes((1, 1, D), pe_dtype))   # double-buffered / row

    ts_budget = max(1, vmem_budget_bytes // per_row_all)
    ts_target = max(1, target_block_bytes // per_row_x)
    ts = max(1, min(S, ts_budget, ts_target))

    steps = pl.cdiv(S, ts)
    if steps == 1:
        # Split across the two v7x TensorCores only if each half stays above the
        # per-step-overhead floor (~0.35 us ~= 0.5 MB of HBM traffic).
        if S > 1 and per_row_x * S >= 2 * min_block_bytes:
            ts = pl.cdiv(S, 2)
    elif steps % 2 == 1:
        ts_even = pl.cdiv(S, steps + 1)
        if per_row_x * ts_even >= min_block_bytes:
            ts = ts_even
    return max(1, ts)


def positional_encoding_forward(
    x,
    pe_table,
    *,
    target_block_bytes=4 << 20,    # ~4 MiB x/out blocks amortize ~0.35 us/step overhead
    min_block_bytes=2 << 20,
    vmem_budget_bytes=24 << 20,    # headroom under the 32 MiB scoped limit (v7x-safe)
    vmem_limit_bytes=32 << 20,     # raise on v5e/v6e if desired (128 MiB physical VMEM)
):
    """y = x + pe[:S]   (eval-mode dropout == identity).

    x        : (S, B, D), any float dtype.
    pe_table : (max_len, 1, D) or (max_len, D) sinusoidal buffer (float32 like PyTorch).
    """
    S, B, D = x.shape
    if pe_table.ndim == 2:
        pe_table = pe_table[:, None, :]
    assert pe_table.shape[0] >= S and pe_table.shape[2] == D

    # Match PyTorch dtype promotion: float32 pe promotes bf16/f16 inputs to float32.
    out_dtype = jnp.result_type(x.dtype, pe_table.dtype)
    pe = pe_table[:S]                                                            # (S, 1, D)

    ts = _pick_seq_tile(
        S, B, D, x.dtype, pe.dtype, out_dtype,
        target_block_bytes=target_block_bytes,
        min_block_bytes=min_block_bytes,
        vmem_budget_bytes=vmem_budget_bytes,
    )
    grid = (pl.cdiv(S, ts),)   # ragged tail allowed; Pallas masks the write-back

    cost = pl.CostEstimate(
        flops=S * B * D,
        transcendentals=0,
        bytes_accessed=S * B * D * (jnp.dtype(x.dtype).itemsize
                                    + jnp.dtype(out_dtype).itemsize)
                       + S * D * jnp.dtype(pe.dtype).itemsize,
    )

    return pl.pallas_call(
        _pos_add_kernel,
        out_shape=jax.ShapeDtypeStruct((S, B, D), out_dtype),
        grid_spec=pltpu.PrefetchScalarGridSpec(
            num_scalar_prefetch=0,
            grid=grid,
            in_specs=[
                pl.BlockSpec((ts, B, D), lambda i: (i, 0, 0)),   # x: contiguous seq rows
                pl.BlockSpec((ts, 1, D), lambda i: (i, 0, 0)),   # pe: broadcast over batch
            ],
            out_specs=pl.BlockSpec((ts, B, D), lambda i: (i, 0, 0)),
        ),
        compiler_params=pltpu.CompilerParams(
            dimension_semantics=("parallel",),
            vmem_limit_bytes=vmem_limit_bytes,
        ),
        cost_estimate=cost,
    )(x, pe)


def reference(x, pe_table):
    if pe_table.ndim == 2:
        pe_table = pe_table[:, None, :]
    return x + pe_table[: x.shape[0]]


if __name__ == "__main__":
    key = jax.random.PRNGKey(0)

    # Small, layout-friendly demo: D multiple of 128 (lane-dense stores), B = 8 (full
    # sublanes).  S = 50 with a deliberately small block target forces a multi-step,
    # ragged grid (4 steps of 16 rows, last one masked) — the same code path that
    # production ViT lengths (197 / 577) take with the default multi-MiB targets.
    S, B, D = 50, 8, 128
    MAX_LEN = 64       # stand-in for the module's max_len = 4096

    x = jax.random.normal(key, (S, B, D), dtype=jnp.float32)
    pe_table = sinusoidal_pos_encoding(MAX_LEN, D)                    # (64, 1, 128) f32

    out = jax.block_until_ready(
        positional_encoding_forward(
            x,
            pe_table,
            target_block_bytes=64 * 1024,   # shrink tiles at demo size -> multi-step grid
            min_block_bytes=16 * 1024,
        )
    )
    ref = reference(x, pe_table)

    assert out.shape == (S, B, D) and out.dtype == ref.dtype
    assert jnp.allclose(out, ref, atol=1e-6, rtol=1e-6), "mismatch vs reference"

    print("KERNEL_OK")
</pallas_src>

<mosaic_0001>
module attributes {stable_mosaic.version = 11 : i64} {
  func.func @_pos_add_kernel(%arg0: i32, %arg1: memref<16x8x128xf32, #tpu.memory_space<vmem>>, %arg2: memref<16x1x128xf32, #tpu.memory_space<vmem>>, %arg3: memref<16x8x128xf32, #tpu.memory_space<vmem>>) attributes {dimension_semantics = [#tpu.dimension_semantics<parallel>], iteration_bounds = array<i64: 4>, scalar_prefetch = 0 : i64, scratch_operands = 0 : i64, tpu.core_type = #tpu.core_type<tc>, window_params = [{transform_indices = @transform_0, window_bounds = array<i64: 16, 8, 128>}, {transform_indices = @transform_1, window_bounds = array<i64: 16, 1, 128>}, {transform_indices = @transform_2, window_bounds = array<i64: 16, 8, 128>}]} {
    %c0 = arith.constant 0 : index
    %c0_0 = arith.constant 0 : index
    %c0_1 = arith.constant 0 : index
    %0 = vector.load %arg1[%c0, %c0_0, %c0_1] : memref<16x8x128xf32, #tpu.memory_space<vmem>>, vector<16x8x128xf32>
    %c0_2 = arith.constant 0 : index
    %c0_3 = arith.constant 0 : index
    %c0_4 = arith.constant 0 : index
    %1 = vector.load %arg2[%c0_2, %c0_3, %c0_4] : memref<16x1x128xf32, #tpu.memory_space<vmem>>, vector<16x1x128xf32>
    %2 = vector.broadcast %1 : vector<16x1x128xf32> to vector<16x8x128xf32>
    %3 = arith.addf %0, %2 : vector<16x8x128xf32>
    %c0_5 = arith.constant 0 : index
    %c0_6 = arith.constant 0 : index
    %c0_7 = arith.constant 0 : index
    %4 = vector.load %arg3[%c0_5, %c0_6, %c0_7] : memref<16x8x128xf32, #tpu.memory_space<vmem>>, vector<16x8x128xf32>
    tpu.vector_store %arg3[%c0_5, %c0_6, %c0_7], %3 {strides = array<i32>} : memref<16x8x128xf32, #tpu.memory_space<vmem>>, vector<16x8x128xf32>,
    return
  }
  func.func @transform_0(%arg0: i32) -> (i32, i32, i32) {
    %c0_i32 = arith.constant 0 : i32
    %c0_i32_0 = arith.constant 0 : i32
    %c0_i32_1 = arith.constant 0 : i32
    return %arg0, %c0_i32, %c0_i32_0 : i32, i32, i32
  }
  func.func @transform_1(%arg0: i32) -> (i32, i32, i32) {
    %c0_i32 = arith.constant 0 : i32
    %c0_i32_0 = arith.constant 0 : i32
    %c0_i32_1 = arith.constant 0 : i32
    return %arg0, %c0_i32, %c0_i32_0 : i32, i32, i32
  }
  func.func @transform_2(%arg0: i32) -> (i32, i32, i32) {
    %c0_i32 = arith.constant 0 : i32
    %c0_i32_0 = arith.constant 0 : i32
    %c0_i32_1 = arith.constant 0 : i32
    return %arg0, %c0_i32, %c0_i32_0 : i32, i32, i32
  }
}

</mosaic_0001>

<llo_original>
// kernel: tpu_custom_call.1
$region0: #{tpu_custom_call.1}
  #allocation0 [shape = 'u32[]', space=smem, size = 0x4, offset = 0x4, fixed_abs, tag = 'smem constant byte address 0x4 - core index']
  #allocation1 [shape = 'u32[144,128]{1,0:T(1,128)}', space=vmem, size = 0x12000, scoped, tag = 'internal scratch']
  %s0 = inlined_call_operand.hbm [shape: f32[50,8,128], index: 0, kind: input, shape index: {}]
  %s1 = inlined_call_operand.hbm [shape: f32[50,1,128], index: 1, kind: input, shape index: {}]
  %s2 = inlined_call_operand.hbm [shape: f32[50,8,128], index: 2, kind: output, shape index: {}]
  %s3 = sld [smem:[#allocation0]]
  $region49: #{tpu_custom_call.1} parent=0
    _
  %s5 = ssub.s32 1, %s3
  %s6 = scalar_select 0, %s5, %s3
  $region1: #{tpu_custom_call.1} parent=0
    #allocation2 [shape = 'u8[131072]{0}', space=vmem, size = 0x20000, scoped, tag = 'input window, operand 0']
    #allocation3 [shape = 's32[2]{0}', space=sflag, size = 0x8, scoped, tag = 'scoped memory for tpu_custom_call.1']
    #allocation4 [shape = 's32[2]{0}', space=sflag, size = 0x8, scoped, tag = 'scoped memory for tpu_custom_call.1']
    #allocation5 [shape = 'u8[16384]{0}', space=vmem, size = 0x4000, scoped, tag = 'input window, operand 1']
    #allocation6 [shape = 's32[2]{0}', space=sflag, size = 0x8, scoped, tag = 'scoped memory for tpu_custom_call.1']
    #allocation7 [shape = 'u8[131072]{0}', space=vmem, size = 0x20000, scoped, tag = 'output window, operand 0']
    %7 = vsyncpa [#allocation3], 0
    %s8 = scalar_lea.sflag [#allocation3], 1
    %9 = vsyncpa %s8, 0
    %10 = vsyncpa [#allocation6], 0
    %s11 = scalar_lea.sflag [#allocation6], 1
    %12 = vsyncpa %s11, 0
    %13 = vsyncpa [#allocation4], 0
    %s14 = scalar_lea.sflag [#allocation4], 1
    %15 = vsyncpa %s14, 0
    loop: start=0, step=1, limit=6
    $region2: #{tpu_custom_call.1} parent=1 // loop_pre_header
      _
    $region3: #{tpu_custom_call.1} parent=1 // loop_header
      %s17 = sphi 0, %s21
      %p18 = scmp.ge.s32.totalorder %s17, 6
      %s27 = sphi 0, %s29
      %s30 = sphi 0, %s27
      %s31 = sphi 0, %s30
      %s47 = sphi 0, %s31
      %s53 = sphi 0, %s55
      %s56 = sphi 0, %s53
      %s57 = sphi 0, %s56
      %s73 = sphi 0, %s57
      %s79 = sphi 0, %s81
      %s82 = sphi 0, %s79
      %s83 = sphi 0, %s82
      %s99 = sphi 0, %s83
    $region4: #{tpu_custom_call.1} parent=1 // loop_header_branch
      %20 = sbr.rel (%p18) target = $region8
    $region5: #{tpu_custom_call.1} parent=1 // loop_body
      %s22 = ssub.s32 %s17, 1
      %s23 = ssub.s32 %s17, 2
      %s24 = sadd.s32 %s17, 1
      %s25 = ssub.s32 %s17, %s24
      %p26 = scmp.eq.s32.totalorder %s25, 0
      %s28 = sadd.s32 %s27, 1
      %s29 = scalar_select %p26, %s27, %s28
      %p32 = pneg %p26
      %p33 = scmp.eq.s32.totalorder %s17, 3
      %p34 = por %p32, %p33
      %p35 = scmp.ne.s32.totalorder %s27, %s30
      %p36 = scmp.eq.s32.totalorder %s17, 0
      %p37 = por %p35, %p36
      %p38 = scmp.ne.s32.totalorder %s27, %s30
      %p39 = scmp.eq.s32.totalorder %s22, 3
      %p40 = por %p38, %p39
      %p41 = scmp.ne.s32.totalorder %s30, %s31
      %p42 = scmp.eq.s32.totalorder %s22, 0
      %p43 = por %p41, %p42
      %p44 = scmp.ne.s32.totalorder %s30, %s31
      %p45 = scmp.eq.s32.totalorder %s23, 3
      %p46 = por %p44, %p45
      %p48 = scmp.ne.s32.totalorder %s31, %s47
      %p49 = scmp.eq.s32.totalorder %s23, 0
      %p50 = por %p48, %p49
      %s51 = ssub.s32 %s17, %s24
      %p52 = scmp.eq.s32.totalorder %s51, 0
      %s54 = sadd.s32 %s53, 1
      %s55 = scalar_select %p52, %s53, %s54
      %p58 = pneg %p52
      %p59 = scmp.eq.s32.totalorder %s17, 3
      %p60 = por %p58, %p59
      %p61 = scmp.ne.s32.totalorder %s53, %s56
      %p62 = scmp.eq.s32.totalorder %s17, 0
      %p63 = por %p61, %p62
      %p64 = scmp.ne.s32.totalorder %s53, %s56
      %p65 = scmp.eq.s32.totalorder %s22, 3
      %p66 = por %p64, %p65
      %p67 = scmp.ne.s32.totalorder %s56, %s57
      %p68 = scmp.eq.s32.totalorder %s22, 0
      %p69 = por %p67, %p68
      %p70 = scmp.ne.s32.totalorder %s56, %s57
      %p71 = scmp.eq.s32.totalorder %s23, 3
      %p72 = por %p70, %p71
      %p74 = scmp.ne.s32.totalorder %s57, %s73
      %p75 = scmp.eq.s32.totalorder %s23, 0
      %p76 = por %p74, %p75
      %s77 = ssub.s32 %s17, %s24
      %p78 = scmp.eq.s32.totalorder %s77, 0
      %s80 = sadd.s32 %s79, 1
      %s81 = scalar_select %p78, %s79, %s80
      %p84 = pneg %p78
      %p85 = scmp.eq.s32.totalorder %s17, 3
      %p86 = por %p84, %p85
      %p87 = scmp.ne.s32.totalorder %s79, %s82
      %p88 = scmp.eq.s32.totalorder %s17, 0
      %p89 = por %p87, %p88
      %p90 = scmp.ne.s32.totalorder %s79, %s82
      %p91 = scmp.eq.s32.totalorder %s22, 3
      %p92 = por %p90, %p91
      %p93 = scmp.ne.s32.totalorder %s82, %s83
      %p94 = scmp.eq.s32.totalorder %s22, 0
      %p95 = por %p93, %p94
      %p96 = scmp.ne.s32.totalorder %s82, %s83
      %p97 = scmp.eq.s32.totalorder %s23, 3
      %p98 = por %p96, %p97
      %p100 = scmp.ne.s32.totalorder %s83, %s99
      %p101 = scmp.eq.s32.totalorder %s23, 0
      %p102 = por %p100, %p101
      %p103 = scmp.le.s32.totalorder 1, %s17
      %p104 = scmp.lt.s32.totalorder %s17, 5
      %p105 = pnand %p103, %p104
      %p106 = pneg %p105
      // Predicated region
      $region9: #{tpu_custom_call.1} parent=5 // pred_check
        _
      $region10: #{tpu_custom_call.1} parent=5 // pred_check_branch
        %108 = sbr.rel (%p105) target = $region12
      $region11: #{tpu_custom_call.1} parent=5 // pred_region
        %s109 = ssub.s32 %s17, 1
      $region12: #{tpu_custom_call.1} parent=5 // pred_fallthru
        _
      %p110 = scmp.lt.s32.totalorder %s17, 4
      // Predicated region
      $region13: #{tpu_custom_call.1} parent=5 // pred_check
        %p111 = pneg %p110
      $region14: #{tpu_custom_call.1} parent=5 // pred_check_branch
        %113 = sbr.rel (%p111) target = $region16
      $region15: #{tpu_custom_call.1} parent=5 // pred_region
        // Predicated region
        $region17: #{tpu_custom_call.1} parent=15 // pred_check
          %p114 = pneg %p37
        $region18: #{tpu_custom_call.1} parent=15 // pred_check_branch
          %116 = sbr.rel (%p114) target = $region20
        $region19: #{tpu_custom_call.1} parent=15 // pred_region
          %s117 = sand.u32 %s27, 1
          %s118 = scalar_lea.sflag [#allocation3], %s117
          %s119 = sand.u32 %s27, 1
          %s120 = smul.addr %s119, 128
          %s121 = scalar_lea.vmem [#allocation2], %s120
          %s122 = smul.u32 16, %s17
          %s123 = ssub.s32 50, %s122
          %p124 = scmp.lt.s32.totalorder %s123, 16
          %s125 = scalar_select %p124, %s123, 16
          %s126 = smul.u32 128, %s125
          %s128 = ssub.s32 2048, %s126
          %129 = vsyncadd %s118, %s128
          %p130 = scmp.ne.s32.totalorder 0, %s126
          %s131 = smul.addr %s122, 128
          %s132 = scalar_lea.hbm %s0, %s131
          %s133 = smul.u32 8, %s125
          %s134 = sshll.u32 %s121, 4
          %s135 = int_to_ptr.vmem [resolvable:$true] %s134
          %s136 = sshll.u32 %s133, 4
          %140 = dma.hbm_to_vmem [thread:$0]  (%p130), %s132, %s136, %s135, %s118, 128, 128, 8
        $region20: #{tpu_custom_call.1} parent=15 // pred_fallthru
          _
        // Predicated region
        $region21: #{tpu_custom_call.1} parent=15 // pred_check
          %p141 = pneg %p63
        $region22: #{tpu_custom_call.1} parent=15 // pred_check_branch
          %143 = sbr.rel (%p141) target = $region24
        $region23: #{tpu_custom_call.1} parent=15 // pred_region
          %s144 = sand.u32 %s53, 1
          %s145 = scalar_lea.sflag [#allocation6], %s144
          %s146 = sand.u32 %s53, 1
          %s147 = smul.addr %s146, 16
          %s148 = scalar_lea.vmem [#allocation5], %s147
          %s149 = smul.u32 16, %s17
          %s150 = ssub.s32 50, %s149
          %p151 = scmp.lt.s32.totalorder %s150, 16
          %s152 = scalar_select %p151, %s150, 16
          %s153 = smul.u32 16, %s152
          %s155 = ssub.s32 256, %s153
          %156 = vsyncadd %s145, %s155
          %p157 = scmp.ne.s32.totalorder 0, %s153
          %s158 = smul.addr %s149, 16
          %s159 = scalar_lea.hbm %s1, %s158
          %s160 = sshll.u32 %s148, 4
          %s161 = int_to_ptr.vmem [resolvable:$true] %s160
          %s162 = sshll.u32 %s152, 4
          %166 = dma.hbm_to_vmem [thread:$0]  (%p157), %s159, %s162, %s161, %s145, 16, 16, 1
        $region24: #{tpu_custom_call.1} parent=15 // pred_fallthru
          _
      $region16: #{tpu_custom_call.1} parent=5 // pred_fallthru
        _
      %p167 = scmp.le.s32.totalorder 1, %s17
      %p168 = scmp.lt.s32.totalorder %s17, 5
      %p169 = pnand %p167, %p168
      %p170 = pneg %p169
      // Predicated region
      $region25: #{tpu_custom_call.1} parent=5 // pred_check
        _
      $region26: #{tpu_custom_call.1} parent=5 // pred_check_branch
        %172 = sbr.rel (%p169) target = $region28
      $region27: #{tpu_custom_call.1} parent=5 // pred_region
        %s173 = ssub.s32 %s17, 1
        %s174 = sand.u32 %s30, 1
        %s175 = scalar_lea.sflag [#allocation3], %s174
        %s176 = sand.u32 %s30, 1
        %s177 = smul.addr %s176, 128
        %s178 = scalar_lea.vmem [#allocation2], %s177
        // Predicated region
        $region29: #{tpu_custom_call.1} parent=27 // pred_check
          %p179 = pneg %p43
        $region30: #{tpu_custom_call.1} parent=27 // pred_check_branch
          %181 = sbr.rel (%p179) target = $region32
        $region31: #{tpu_custom_call.1} parent=27 // pred_region
          %182 = dma.done %s175, 2048
        $region32: #{tpu_custom_call.1} parent=27 // pred_fallthru
          _
        %s183 = sand.u32 %s56, 1
        %s184 = scalar_lea.sflag [#allocation6], %s183
        %s185 = sand.u32 %s56, 1
        %s186 = smul.addr %s185, 16
        %s187 = scalar_lea.vmem [#allocation5], %s186
        // Predicated region
        $region33: #{tpu_custom_call.1} parent=27 // pred_check
          %p188 = pneg %p69
        $region34: #{tpu_custom_call.1} parent=27 // pred_check_branch
          %190 = sbr.rel (%p188) target = $region36
        $region35: #{tpu_custom_call.1} parent=27 // pred_region
          %191 = dma.done %s184, 256
        $region36: #{tpu_custom_call.1} parent=27 // pred_fallthru
          _
        %s192 = sand.u32 %s30, 1
        %s193 = scalar_lea.sflag [#allocation3], %s192
        %s194 = sand.u32 %s30, 1
        %s195 = smul.addr %s194, 128
        %s196 = scalar_lea.vmem [#allocation2], %s195
        %p197 = pneg %p43
        %p198 = pneg %p40
        %s199 = sand.u32 %s56, 1
        %s200 = scalar_lea.sflag [#allocation6], %s199
        %s201 = sand.u32 %s56, 1
        %s202 = smul.addr %s201, 16
        %s203 = scalar_lea.vmem [#allocation5], %s202
        %p204 = pneg %p69
        %p205 = pneg %p66
        %p206 = pneg %p95
        %p207 = pneg %p92
        %s208 = sand.u32 %s82, 1
        %s209 = scalar_lea.sflag [#allocation4], %s208
        %s210 = sand.u32 %s82, 1
        %s211 = smul.addr %s210, 128
        %s212 = scalar_lea.vmem [#allocation7], %s211
        %s213 = smul.u32 16, %s22
        %s214 = ssub.s32 50, %s213
        %p215 = scmp.lt.s32.totalorder %s214, 16
        %s216 = scalar_select %p215, %s214, 16
        %s217 = smul.u32 128, %s216
        %s218 = smul.u32 16, %s22
        %s219 = ssub.s32 50, %s218
        %p220 = scmp.lt.s32.totalorder %s219, 16
        %s221 = scalar_select %p220, %s219, 16
        %s222 = smul.u32 16, %s221
        %s223 = smul.u32 16, %s22
        %s224 = ssub.s32 50, %s223
        %p225 = scmp.lt.s32.totalorder %s224, 16
        %s226 = scalar_select %p225, %s224, 16
        %s227 = smul.u32 128, %s226
        %v228 = vld [vmem:[%s178] sm:$0xff]
        %v229 = vld [vmem:[%s178 + $0x8] sm:$0xff]
        %v230 = vld [vmem:[%s178 + $0x10] sm:$0xff]
        %v231 = vld [vmem:[%s178 + $0x18] sm:$0xff]
        %v232 = vld [vmem:[%s178 + $0x20] sm:$0xff]
        %v233 = vld [vmem:[%s178 + $0x28] sm:$0xff]
        %v234 = vld [vmem:[%s178 + $0x30] sm:$0xff]
        %v235 = vld [vmem:[%s178 + $0x38] sm:$0xff]
        %v236 = vld [vmem:[%s178 + $0x40] sm:$0xff]
        %v237 = vld [vmem:[%s178 + $0x48] sm:$0xff]
        %v238 = vld [vmem:[%s178 + $0x50] sm:$0xff]
        %v239 = vld [vmem:[%s178 + $0x58] sm:$0xff]
        %v240 = vld [vmem:[%s178 + $0x60] sm:$0xff]
        %v241 = vld [vmem:[%s178 + $0x68] sm:$0xff]
        %v242 = vld [vmem:[%s178 + $0x70] sm:$0xff]
        %v243 = vld [vmem:[%s178 + $0x78] sm:$0xff]
        %v244 = vld [vmem:[%s187] sm:$0x1]
        %v245 = vld [vmem:[%s187 + $0x1] sm:$0x1]
        %v246 = vld [vmem:[%s187 + $0x2] sm:$0x1]
        %v247 = vld [vmem:[%s187 + $0x3] sm:$0x1]
        %v248 = vld [vmem:[%s187 + $0x4] sm:$0x1]
        %v249 = vld [vmem:[%s187 + $0x5] sm:$0x1]
        %v250 = vld [vmem:[%s187 + $0x6] sm:$0x1]
        %v251 = vld [vmem:[%s187 + $0x7] sm:$0x1]
        %v252 = vld [vmem:[%s187 + $0x8] sm:$0x1]
        %v253 = vld [vmem:[%s187 + $0x9] sm:$0x1]
        %v254 = vld [vmem:[%s187 + $0xa] sm:$0x1]
        %v255 = vld [vmem:[%s187 + $0xb] sm:$0x1]
        %v256 = vld [vmem:[%s187 + $0xc] sm:$0x1]
        %v257 = vld [vmem:[%s187 + $0xd] sm:$0x1]
        %v258 = vld [vmem:[%s187 + $0xe] sm:$0x1]
        %v259 = vld [vmem:[%s187 + $0xf] sm:$0x1]
        %v276 = vlaneseq
        %v277 = vshrl.u32 %v276, 7
        %v278 = vsub.s32 0, %v277
        %v279 = vrot.slane %v244, %v278
        %v280 = vlaneseq
        %v281 = vshrl.u32 %v280, 7
        %v282 = vsub.s32 0, %v281
        %v283 = vrot.slane %v245, %v282
        %v284 = vlaneseq
        %v285 = vshrl.u32 %v284, 7
        %v286 = vsub.s32 0, %v285
        %v287 = vrot.slane %v246, %v286
        %v288 = vlaneseq
        %v289 = vshrl.u32 %v288, 7
        %v290 = vsub.s32 0, %v289
        %v291 = vrot.slane %v247, %v290
        %v292 = vlaneseq
        %v293 = vshrl.u32 %v292, 7
        %v294 = vsub.s32 0, %v293
        %v295 = vrot.slane %v248, %v294
        %v296 = vlaneseq
        %v297 = vshrl.u32 %v296, 7
        %v298 = vsub.s32 0, %v297
        %v299 = vrot.slane %v249, %v298
        %v300 = vlaneseq
        %v301 = vshrl.u32 %v300, 7
        %v302 = vsub.s32 0, %v301
        %v303 = vrot.slane %v250, %v302
        %v304 = vlaneseq
        %v305 = vshrl.u32 %v304, 7
        %v306 = vsub.s32 0, %v305
        %v307 = vrot.slane %v251, %v306
        %v308 = vlaneseq
        %v309 = vshrl.u32 %v308, 7
        %v310 = vsub.s32 0, %v309
        %v311 = vrot.slane %v252, %v310
        %v312 = vlaneseq
        %v313 = vshrl.u32 %v312, 7
        %v314 = vsub.s32 0, %v313
        %v315 = vrot.slane %v253, %v314
        %v316 = vlaneseq
        %v317 = vshrl.u32 %v316, 7
        %v318 = vsub.s32 0, %v317
        %v319 = vrot.slane %v254, %v318
        %v320 = vlaneseq
        %v321 = vshrl.u32 %v320, 7
        %v322 = vsub.s32 0, %v321
        %v323 = vrot.slane %v255, %v322
        %v324 = vlaneseq
        %v325 = vshrl.u32 %v324, 7
        %v326 = vsub.s32 0, %v325
        %v327 = vrot.slane %v256, %v326
        %v328 = vlaneseq
        %v329 = vshrl.u32 %v328, 7
        %v330 = vsub.s32 0, %v329
        %v331 = vrot.slane %v257, %v330
        %v332 = vlaneseq
        %v333 = vshrl.u32 %v332, 7
        %v334 = vsub.s32 0, %v333
        %v335 = vrot.slane %v258, %v334
        %v336 = vlaneseq
        %v337 = vshrl.u32 %v336, 7
        %v338 = vsub.s32 0, %v337
        %v339 = vrot.slane %v259, %v338
        %v356 = vadd.f32 %v228, %v279
        %v357 = vadd.f32 %v229, %v283
        %v358 = vadd.f32 %v230, %v287
        %v359 = vadd.f32 %v231, %v291
        %v360 = vadd.f32 %v232, %v295
        %v361 = vadd.f32 %v233, %v299
        %v362 = vadd.f32 %v234, %v303
        %v363 = vadd.f32 %v235, %v307
        %v364 = vadd.f32 %v236, %v311
        %v365 = vadd.f32 %v237, %v315
        %v366 = vadd.f32 %v238, %v319
        %v367 = vadd.f32 %v239, %v323
        %v368 = vadd.f32 %v240, %v327
        %v369 = vadd.f32 %v241, %v331
        %v370 = vadd.f32 %v242, %v335
        %v371 = vadd.f32 %v243, %v339
        %372 = vst [vmem:[%s212] sm:$0xff] %v356
        %373 = vst [vmem:[%s212 + $0x8] sm:$0xff] %v357
        %374 = vst [vmem:[%s212 + $0x10] sm:$0xff] %v358
        %375 = vst [vmem:[%s212 + $0x18] sm:$0xff] %v359
        %376 = vst [vmem:[%s212 + $0x20] sm:$0xff] %v360
        %377 = vst [vmem:[%s212 + $0x28] sm:$0xff] %v361
        %378 = vst [vmem:[%s212 + $0x30] sm:$0xff] %v362
        %379 = vst [vmem:[%s212 + $0x38] sm:$0xff] %v363
        %380 = vst [vmem:[%s212 + $0x40] sm:$0xff] %v364
        %381 = vst [vmem:[%s212 + $0x48] sm:$0xff] %v365
        %382 = vst [vmem:[%s212 + $0x50] sm:$0xff] %v366
        %383 = vst [vmem:[%s212 + $0x58] sm:$0xff] %v367
        %384 = vst [vmem:[%s212 + $0x60] sm:$0xff] %v368
        %385 = vst [vmem:[%s212 + $0x68] sm:$0xff] %v369
        %386 = vst [vmem:[%s212 + $0x70] sm:$0xff] %v370
        %387 = vst [vmem:[%s212 + $0x78] sm:$0xff] %v371
        %s388 = sand.u32 %s82, 1
        %s389 = scalar_lea.sflag [#allocation4], %s388
        %s390 = sand.u32 %s82, 1
        %s391 = smul.addr %s390, 128
        %s392 = scalar_lea.vmem [#allocation7], %s391
        // Predicated region
        $region37: #{tpu_custom_call.1} parent=27 // pred_check
          %p393 = pneg %p92
        $region38: #{tpu_custom_call.1} parent=27 // pred_check_branch
          %395 = sbr.rel (%p393) target = $region40
        $region39: #{tpu_custom_call.1} parent=27 // pred_region
          %s396 = smul.u32 16, %s22
          %s397 = ssub.s32 50, %s396
          %p398 = scmp.lt.s32.totalorder %s397, 16
          %s399 = scalar_select %p398, %s397, 16
          %s400 = smul.u32 128, %s399
          %s402 = ssub.s32 2048, %s400
          %403 = vsyncadd %s389, %s402
          %p404 = scmp.ne.s32.totalorder 0, %s400
          %s405 = smul.addr %s396, 128
          %s406 = scalar_lea.hbm %s2, %s405
          %s407 = smul.u32 8, %s399
          %s408 = sshll.u32 %s392, 4
          %s409 = int_to_ptr.vmem [resolvable:$true] %s408
          %s410 = sshll.u32 %s407, 4
          %414 = dma.vmem_to_hbm [thread:$0]  (%p404), %s409, %s410, %s406, %s389, 128, 128, 8
        $region40: #{tpu_custom_call.1} parent=27 // pred_fallthru
          _
      $region28: #{tpu_custom_call.1} parent=5 // pred_fallthru
        _
      %p415 = scmp.le.s32.totalorder 2, %s17
      // Predicated region
      $region41: #{tpu_custom_call.1} parent=5 // pred_check
        %p416 = pneg %p415
      $region42: #{tpu_custom_call.1} parent=5 // pred_check_branch
        %418 = sbr.rel (%p416) target = $region44
      $region43: #{tpu_custom_call.1} parent=5 // pred_region
        %s419 = ssub.s32 %s17, 2
        // Predicated region
        $region45: #{tpu_custom_call.1} parent=43 // pred_check
          %p420 = pneg %p98
        $region46: #{tpu_custom_call.1} parent=43 // pred_check_branch
          %422 = sbr.rel (%p420) target = $region48
        $region47: #{tpu_custom_call.1} parent=43 // pred_region
          %s423 = sand.u32 %s83, 1
          %s424 = scalar_lea.sflag [#allocation4], %s423
          %s425 = sand.u32 %s83, 1
          %s426 = smul.addr %s425, 128
          %s427 = scalar_lea.vmem [#allocation7], %s426
          %428 = dma.done %s424, 2048
        $region48: #{tpu_custom_call.1} parent=43 // pred_fallthru
          _
      $region44: #{tpu_custom_call.1} parent=5 // pred_fallthru
        _
    $region6: #{tpu_custom_call.1} parent=1 // loop_footer
      %s21 = sadd.s32 1, %s17
    $region7: #{tpu_custom_call.1} parent=1 // loop_footer_branch
      %16 = sbr.rel target = $region3
    $region8: #{tpu_custom_call.1} parent=1 // loop_exit
      _
    %429 = vsyncpa [#allocation3], 1
    %s430 = scalar_lea.sflag [#allocation3], 1
    %431 = vsyncpa %s430, 1
    %432 = vsyncpa [#allocation6], 1
    %s433 = scalar_lea.sflag [#allocation6], 1
    %434 = vsyncpa %s433, 1
    %435 = vsyncpa [#allocation4], 1
    %s436 = scalar_lea.sflag [#allocation4], 1
    %437 = vsyncpa %s436, 1

</llo_original>
